<compile_context>
chip_gen: v5e
topology: v5e:2x2
jax: 0.10.0
libtpu: 0.0.40
codegen_flags: <defaults>
</compile_context>

<pallas_src>
import functools

import jax
import jax.numpy as jnp
from jax.experimental import pallas as pl
from jax.experimental.pallas import tpu as pltpu


# --------------------------------- conv + loss kernel --------------------------------
def _ttd_conv_kernel(x_ref, w_ref, b2_ref, mask_ref, fout_ref, sq_ref, rhs_ref, *, K, Wp):
    # x_ref   : (1, Cin, Sp)       bf16 padded image, channel-major, spatial flattened (Sp = Hp*Wp)
    # w_ref   : (2*Cout, K*K*Cin)  bf16 fused weights: rows [0:Cout)=W0+W1, [Cout:2*Cout)=W1-W0,
    #                              columns ordered (kh, kw, cin)
    # b2_ref  : (Cout, 1)          f32, 2*bias (one bias per conv branch)
    # mask_ref: (1, Sp)            f32, 1.0 at valid "wide" output positions, else 0.0
    # fout_ref: (1, Cout, Sp)      f32, conv0+conv1 in wide coordinates (cropped by the wrapper)
    # sq_ref  : (1, 1, 1)          f32, per-batch sum((conv1-conv0)^2) over valid positions
    # rhs_ref : (K*K*Cin, Sp)      bf16 VMEM scratch: im2col built from K*K lane-rolled copies
    Cin = x_ref.shape[1]
    Cout = b2_ref.shape[0]
    Sp = x_ref.shape[2]

    x = x_ref[0]                                              # (Cin, Sp) bf16
    for kh in range(K):
        for kw in range(K):
            t = kh * K + kw
            s = kh * Wp + kw
            # shifted[p] = x[p + s]  (wrapped tail positions are masked / cropped later)
            shifted = x if s == 0 else jnp.roll(x, -s, axis=1)
            rhs_ref[t * Cin:(t + 1) * Cin, :] = shifted

    # Single fused matmul: (2*Cout, K*K*Cin) @ (K*K*Cin, Sp) -> (2*Cout, Sp), f32 accumulation.
    acc = jnp.dot(w_ref[...], rhs_ref[...], preferred_element_type=jnp.float32)
    sum_part = acc[:Cout, :]                                  # conv0 + conv1 (bias not yet added)
    diff_part = acc[Cout:, :]                                 # conv1 - conv0 (bias cancels)

    d = diff_part * mask_ref[...]                             # zero invalid wide positions
    sq_ref[...] = jnp.sum(d * d).reshape(1, 1, 1)
    fout_ref[...] = (sum_part + b2_ref[...]).reshape(1, Cout, Sp)


def ttd_forward(x_nchw, params, *, K, P):
    """Forward pass of ttd (type == 'ttd', two factor pairs, act_loss='l2'/'mean')."""
    f0, f1, f2, f3, bias = params
    N, Cin, H, W = x_nchw.shape
    Cout = f0.shape[1]
    Hp, Wp = H + 2 * P, W + 2 * P
    H_out, W_out = Hp - K + 1, Wp - K + 1
    Sp = Hp * Wp

    # --- TT weight reconstruction in plain JAX (tiny matmuls, fused by XLA) ---
    w0 = f0[0] @ f1[:, :, 0]                                  # (Cout, Cin*K*K), cols = (cin, kh, kw)
    w1 = f2[0] @ f3[:, :, 0]
    w_cat = jnp.concatenate([w0 + w1, w1 - w0], axis=0)       # (2*Cout, Cin*K*K)
    # Reorder columns to (kh, kw, cin) to match the im2col row order built in the kernel.
    w_k = (w_cat.reshape(2 * Cout, Cin, K, K)
                 .transpose(0, 2, 3, 1)
                 .reshape(2 * Cout, K * K * Cin)
                 .astype(jnp.bfloat16))

    # --- channel-major, spatially flattened, zero-padded input (padding_mode='zeros') ---
    x_pad = jnp.pad(x_nchw, ((0, 0), (0, 0), (P, P), (P, P)))  # (N, Cin, Hp, Wp)
    x_flat = x_pad.reshape(N, Cin, Sp).astype(jnp.bfloat16)

    bias2 = (2.0 * bias).reshape(Cout, 1).astype(jnp.float32)

    # Validity mask over the "wide" (Hp x Wp) output coordinates.
    p = jnp.arange(Sp)
    mask = (((p // Wp) < H_out) & ((p % Wp) < W_out)).astype(jnp.float32).reshape(1, Sp)

    kernel = functools.partial(_ttd_conv_kernel, K=K, Wp=Wp)
    fout_wide, sqsum = pl.pallas_call(
        kernel,
        out_shape=(jax.ShapeDtypeStruct((N, Cout, Sp), jnp.float32),
                   jax.ShapeDtypeStruct((N, 1, 1), jnp.float32)),
        grid=(N,),
        in_specs=[
            pl.BlockSpec((1, Cin, Sp), lambda b: (b, 0, 0)),
            pl.BlockSpec((2 * Cout, K * K * Cin), lambda b: (0, 0)),
            pl.BlockSpec((Cout, 1), lambda b: (0, 0)),
            pl.BlockSpec((1, Sp), lambda b: (0, 0)),
        ],
        out_specs=[
            pl.BlockSpec((1, Cout, Sp), lambda b: (b, 0, 0)),
            pl.BlockSpec((1, 1, 1), lambda b: (b, 0, 0)),
        ],
        scratch_shapes=[pltpu.VMEM((K * K * Cin, Sp), jnp.bfloat16)],
        compiler_params=pltpu.CompilerParams(dimension_semantics=("parallel",)),
    )(x_flat, w_k, bias2, mask)

    # Crop the wide output back to NCHW (cheap slice, no transpose).
    fout = fout_wide.reshape(N, Cout, Hp, Wp)[:, :, :H_out, :W_out]
    lossy_term = 0.0 + jnp.sum(sqsum) / (N * Cout * H_out * W_out)  # F.mse_loss(out1, out0, 'mean')
    lossy_term1 = 0.0                                               # opt.act_loss1 == ''
    # TODO(synk): other opt branches (l1/l1l2/kld/ortho losses, conv_transpose, groups>1,
    # stride>1, non-'zeros' padding_mode) are alternative configs and not emitted here.
    return fout, lossy_term, lossy_term1


if __name__ == "__main__":
    key = jax.random.PRNGKey(0)
    N, Cin, Cout, H, W, K, P = 2, 8, 16, 16, 16, 3, 1

    # f_shape() with ttd_type='S-Cl^2': temp = [Cout, Cin*K*K] = [16, 72], rank = 16
    # cont_facs = (0.5, 0.5) -> TT ranks r0 = r1 = 8
    rank = min(Cout, Cin * K * K)
    r0 = max(1, int(0.5 * rank))
    r1 = max(1, int(1.0 * rank)) - int(0.5 * rank)

    ks = jax.random.split(key, 6)
    std = 0.3  # deterministic stand-in for random.choice(options) in f_shape()
    f0 = std * jax.random.normal(ks[0], (1, Cout, r0), jnp.float32)
    f1 = std * jax.random.normal(ks[1], (r0, Cin * K * K, 1), jnp.float32)
    f2 = std * jax.random.normal(ks[2], (1, Cout, r1), jnp.float32)
    f3 = std * jax.random.normal(ks[3], (r1, Cin * K * K, 1), jnp.float32)
    bias = jnp.zeros((Cout,), jnp.float32)  # nn.init.constant_(Tensor(out_channels), 0.0)
    x = jax.random.normal(ks[4], (N, Cin, H, W), jnp.float32)

    fout, l0, l1 = ttd_forward(x, (f0, f1, f2, f3, bias), K=K, P=P)
    jax.block_until_ready(fout)
    jax.block_until_ready(l0)

    # --- pure-JAX f32 reference check ---
    w0 = (f0[0] @ f1[:, :, 0]).reshape(Cout, Cin, K, K)
    w1 = (f2[0] @ f3[:, :, 0]).reshape(Cout, Cin, K, K)

    def conv(xx, ww):
        return jax.lax.conv_general_dilated(
            xx, ww, (1, 1), ((P, P), (P, P)),
            dimension_numbers=("NCHW", "OIHW", "NCHW")) + bias[None, :, None, None]

    o0, o1 = conv(x, w0), conv(x, w1)
    ref_out = o0 + o1
    ref_loss = jnp.mean((o1 - o0) ** 2)
    # Kernel uses bf16 MXU inputs with f32 accumulation -> slightly looser atol on fout.
    assert jnp.allclose(fout, ref_out, rtol=5e-2, atol=1e-1), float(jnp.max(jnp.abs(fout - ref_out)))
    assert jnp.allclose(l0, ref_loss, rtol=5e-2, atol=5e-2), (float(l0), float(ref_loss))

    print("KERNEL_OK")
</pallas_src>

<mosaic_0001>
module attributes {stable_mosaic.version = 11 : i64} {
  func.func @_ttd_conv_kernel(%arg0: i32, %arg1: memref<1x8x324xbf16, #tpu.memory_space<vmem>>, %arg2: memref<32x72xbf16, #tpu.memory_space<vmem>>, %arg3: memref<16x1xf32, #tpu.memory_space<vmem>>, %arg4: memref<1x324xf32, #tpu.memory_space<vmem>>, %arg5: memref<1x16x324xf32, #tpu.memory_space<vmem>>, %arg6: memref<1x1x1xf32, #tpu.memory_space<vmem>>, %arg7: memref<72x324xbf16, #tpu.memory_space<vmem>>) attributes {dimension_semantics = [#tpu.dimension_semantics<parallel>], iteration_bounds = array<i64: 2>, scalar_prefetch = 0 : i64, scratch_operands = 1 : i64, tpu.core_type = #tpu.core_type<tc>, window_params = [{transform_indices = @transform_0, window_bounds = array<i64: 1, 8, 324>}, {pipeline_mode = #tpu.pipeline_mode<synchronous>, transform_indices = @transform_1, window_bounds = array<i64: 32, 72>}, {pipeline_mode = #tpu.pipeline_mode<synchronous>, transform_indices = @transform_2, window_bounds = array<i64: 16, 1>}, {pipeline_mode = #tpu.pipeline_mode<synchronous>, transform_indices = @transform_3, window_bounds = array<i64: 1, 324>}, {transform_indices = @transform_4, window_bounds = array<i64: 1, 16, 324>}, {transform_indices = @transform_5, window_bounds = array<i64: 1, 1, 1>}]} {
    %c0 = arith.constant 0 : index
    %c0_0 = arith.constant 0 : index
    %c0_1 = arith.constant 0 : index
    %0 = vector.load %arg1[%c0, %c0_0, %c0_1] : memref<1x8x324xbf16, #tpu.memory_space<vmem>>, vector<1x8x324xbf16>
    %1 = vector.shape_cast %0 : vector<1x8x324xbf16> to vector<8x324xbf16>
    %c0_2 = arith.constant 0 : index
    %c0_3 = arith.constant 0 : index
    %2 = vector.load %arg7[%c0_2, %c0_3] : memref<72x324xbf16, #tpu.memory_space<vmem>>, vector<8x324xbf16>
    tpu.vector_store %arg7[%c0_2, %c0_3], %1 {strides = array<i32>} : memref<72x324xbf16, #tpu.memory_space<vmem>>, vector<8x324xbf16>,
    %3 = vector.extract_strided_slice %1 {offsets = [0, 1], sizes = [8, 323], strides = [1, 1]} : vector<8x324xbf16> to vector<8x323xbf16>
    %4 = vector.extract_strided_slice %1 {offsets = [0, 0], sizes = [8, 1], strides = [1, 1]} : vector<8x324xbf16> to vector<8x1xbf16>
    %5 = tpu.concatenate %3, %4 in 1 : vector<8x323xbf16>, vector<8x1xbf16> -> vector<8x324xbf16>
    %c8 = arith.constant 8 : index
    %c0_4 = arith.constant 0 : index
    %6 = vector.load %arg7[%c8, %c0_4] : memref<72x324xbf16, #tpu.memory_space<vmem>>, vector<8x324xbf16>
    tpu.vector_store %arg7[%c8, %c0_4], %5 {strides = array<i32>} : memref<72x324xbf16, #tpu.memory_space<vmem>>, vector<8x324xbf16>,
    %7 = vector.extract_strided_slice %1 {offsets = [0, 2], sizes = [8, 322], strides = [1, 1]} : vector<8x324xbf16> to vector<8x322xbf16>
    %8 = vector.extract_strided_slice %1 {offsets = [0, 0], sizes = [8, 2], strides = [1, 1]} : vector<8x324xbf16> to vector<8x2xbf16>
    %9 = tpu.concatenate %7, %8 in 1 : vector<8x322xbf16>, vector<8x2xbf16> -> vector<8x324xbf16>
    %c16 = arith.constant 16 : index
    %c0_5 = arith.constant 0 : index
    %10 = vector.load %arg7[%c16, %c0_5] : memref<72x324xbf16, #tpu.memory_space<vmem>>, vector<8x324xbf16>
    tpu.vector_store %arg7[%c16, %c0_5], %9 {strides = array<i32>} : memref<72x324xbf16, #tpu.memory_space<vmem>>, vector<8x324xbf16>,
    %11 = vector.extract_strided_slice %1 {offsets = [0, 18], sizes = [8, 306], strides = [1, 1]} : vector<8x324xbf16> to vector<8x306xbf16>
    %12 = vector.extract_strided_slice %1 {offsets = [0, 0], sizes = [8, 18], strides = [1, 1]} : vector<8x324xbf16> to vector<8x18xbf16>
    %13 = tpu.concatenate %11, %12 in 1 : vector<8x306xbf16>, vector<8x18xbf16> -> vector<8x324xbf16>
    %c24 = arith.constant 24 : index
    %c0_6 = arith.constant 0 : index
    %14 = vector.load %arg7[%c24, %c0_6] : memref<72x324xbf16, #tpu.memory_space<vmem>>, vector<8x324xbf16>
    tpu.vector_store %arg7[%c24, %c0_6], %13 {strides = array<i32>} : memref<72x324xbf16, #tpu.memory_space<vmem>>, vector<8x324xbf16>,
    %15 = vector.extract_strided_slice %1 {offsets = [0, 19], sizes = [8, 305], strides = [1, 1]} : vector<8x324xbf16> to vector<8x305xbf16>
    %16 = vector.extract_strided_slice %1 {offsets = [0, 0], sizes = [8, 19], strides = [1, 1]} : vector<8x324xbf16> to vector<8x19xbf16>
    %17 = tpu.concatenate %15, %16 in 1 : vector<8x305xbf16>, vector<8x19xbf16> -> vector<8x324xbf16>
    %c32 = arith.constant 32 : index
    %c0_7 = arith.constant 0 : index
    %18 = vector.load %arg7[%c32, %c0_7] : memref<72x324xbf16, #tpu.memory_space<vmem>>, vector<8x324xbf16>
    tpu.vector_store %arg7[%c32, %c0_7], %17 {strides = array<i32>} : memref<72x324xbf16, #tpu.memory_space<vmem>>, vector<8x324xbf16>,
    %19 = vector.extract_strided_slice %1 {offsets = [0, 20], sizes = [8, 304], strides = [1, 1]} : vector<8x324xbf16> to vector<8x304xbf16>
    %20 = vector.extract_strided_slice %1 {offsets = [0, 0], sizes = [8, 20], strides = [1, 1]} : vector<8x324xbf16> to vector<8x20xbf16>
    %21 = tpu.concatenate %19, %20 in 1 : vector<8x304xbf16>, vector<8x20xbf16> -> vector<8x324xbf16>
    %c40 = arith.constant 40 : index
    %c0_8 = arith.constant 0 : index
    %22 = vector.load %arg7[%c40, %c0_8] : memref<72x324xbf16, #tpu.memory_space<vmem>>, vector<8x324xbf16>
    tpu.vector_store %arg7[%c40, %c0_8], %21 {strides = array<i32>} : memref<72x324xbf16, #tpu.memory_space<vmem>>, vector<8x324xbf16>,
    %23 = vector.extract_strided_slice %1 {offsets = [0, 36], sizes = [8, 288], strides = [1, 1]} : vector<8x324xbf16> to vector<8x288xbf16>
    %24 = vector.extract_strided_slice %1 {offsets = [0, 0], sizes = [8, 36], strides = [1, 1]} : vector<8x324xbf16> to vector<8x36xbf16>
    %25 = tpu.concatenate %23, %24 in 1 : vector<8x288xbf16>, vector<8x36xbf16> -> vector<8x324xbf16>
    %c48 = arith.constant 48 : index
    %c0_9 = arith.constant 0 : index
    %26 = vector.load %arg7[%c48, %c0_9] : memref<72x324xbf16, #tpu.memory_space<vmem>>, vector<8x324xbf16>
    tpu.vector_store %arg7[%c48, %c0_9], %25 {strides = array<i32>} : memref<72x324xbf16, #tpu.memory_space<vmem>>, vector<8x324xbf16>,
    %27 = vector.extract_strided_slice %1 {offsets = [0, 37], sizes = [8, 287], strides = [1, 1]} : vector<8x324xbf16> to vector<8x287xbf16>
    %28 = vector.extract_strided_slice %1 {offsets = [0, 0], sizes = [8, 37], strides = [1, 1]} : vector<8x324xbf16> to vector<8x37xbf16>
    %29 = tpu.concatenate %27, %28 in 1 : vector<8x287xbf16>, vector<8x37xbf16> -> vector<8x324xbf16>
    %c56 = arith.constant 56 : index
    %c0_10 = arith.constant 0 : index
    %30 = vector.load %arg7[%c56, %c0_10] : memref<72x324xbf16, #tpu.memory_space<vmem>>, vector<8x324xbf16>
    tpu.vector_store %arg7[%c56, %c0_10], %29 {strides = array<i32>} : memref<72x324xbf16, #tpu.memory_space<vmem>>, vector<8x324xbf16>,
    %31 = vector.extract_strided_slice %1 {offsets = [0, 38], sizes = [8, 286], strides = [1, 1]} : vector<8x324xbf16> to vector<8x286xbf16>
    %32 = vector.extract_strided_slice %1 {offsets = [0, 0], sizes = [8, 38], strides = [1, 1]} : vector<8x324xbf16> to vector<8x38xbf16>
    %33 = tpu.concatenate %31, %32 in 1 : vector<8x286xbf16>, vector<8x38xbf16> -> vector<8x324xbf16>
    %c64 = arith.constant 64 : index
    %c0_11 = arith.constant 0 : index
    %34 = vector.load %arg7[%c64, %c0_11] : memref<72x324xbf16, #tpu.memory_space<vmem>>, vector<8x324xbf16>
    tpu.vector_store %arg7[%c64, %c0_11], %33 {strides = array<i32>} : memref<72x324xbf16, #tpu.memory_space<vmem>>, vector<8x324xbf16>,
    %c0_12 = arith.constant 0 : index
    %c0_13 = arith.constant 0 : index
    %35 = vector.load %arg2[%c0_12, %c0_13] : memref<32x72xbf16, #tpu.memory_space<vmem>>, vector<32x72xbf16>
    %c0_14 = arith.constant 0 : index
    %c0_15 = arith.constant 0 : index
    %36 = vector.load %arg7[%c0_14, %c0_15] : memref<72x324xbf16, #tpu.memory_space<vmem>>, vector<72x324xbf16>
    %cst = arith.constant dense<0.000000e+00> : vector<32x324xf32>
    %37 = tpu.matmul %35, %36, %cst {dimension_numbers = #tpu.dot_dimension_numbers<[1], [0], [0], [1], [0, 0, 1, 1], [], []>} : vector<32x72xbf16>, vector<72x324xbf16>, vector<32x324xf32> -> vector<32x324xf32>
    %38 = vector.extract_strided_slice %37 {offsets = [0, 0], sizes = [16, 324], strides = [1, 1]} : vector<32x324xf32> to vector<16x324xf32>
    %39 = vector.extract_strided_slice %37 {offsets = [16, 0], sizes = [16, 324], strides = [1, 1]} : vector<32x324xf32> to vector<16x324xf32>
    %c0_16 = arith.constant 0 : index
    %c0_17 = arith.constant 0 : index
    %40 = vector.load %arg4[%c0_16, %c0_17] : memref<1x324xf32, #tpu.memory_space<vmem>>, vector<1x324xf32>
    %41 = vector.broadcast %40 : vector<1x324xf32> to vector<16x324xf32>
    %42 = arith.mulf %39, %41 : vector<16x324xf32>
    %43 = arith.mulf %42, %42 : vector<16x324xf32>
    %44 = vector.shape_cast %43 : vector<16x324xf32> to vector<1x16x324xf32>
    %cst_18 = arith.constant dense<0.000000e+00> : vector<1xf32>
    %45 = vector.multi_reduction <add>, %44, %cst_18 [1, 2] : vector<1x16x324xf32> to vector<1xf32>
    %46 = vector.shape_cast %45 : vector<1xf32> to vector<1x1x1xf32>
    %47 = vector.extract %46[0, 0, 0] : f32 from vector<1x1x1xf32>
    %48 = vector.broadcast %47 : f32 to vector<1x1x1xf32>
    %c0_19 = arith.constant 0 : index
    %c0_20 = arith.constant 0 : index
    %c0_21 = arith.constant 0 : index
    %49 = vector.load %arg6[%c0_19, %c0_20, %c0_21] : memref<1x1x1xf32, #tpu.memory_space<vmem>>, vector<1x1x1xf32>
    tpu.vector_store %arg6[%c0_19, %c0_20, %c0_21], %48 {strides = array<i32>} : memref<1x1x1xf32, #tpu.memory_space<vmem>>, vector<1x1x1xf32>,
    %c0_22 = arith.constant 0 : index
    %c0_23 = arith.constant 0 : index
    %50 = vector.load %arg3[%c0_22, %c0_23] : memref<16x1xf32, #tpu.memory_space<vmem>>, vector<16x1xf32>
    %51 = vector.broadcast %50 : vector<16x1xf32> to vector<16x324xf32>
    %52 = arith.addf %38, %51 : vector<16x324xf32>
    %53 = vector.shape_cast %52 : vector<16x324xf32> to vector<1x16x324xf32>
    %c0_24 = arith.constant 0 : index
    %c0_25 = arith.constant 0 : index
    %c0_26 = arith.constant 0 : index
    %54 = vector.load %arg5[%c0_24, %c0_25, %c0_26] : memref<1x16x324xf32, #tpu.memory_space<vmem>>, vector<1x16x324xf32>
    tpu.vector_store %arg5[%c0_24, %c0_25, %c0_26], %53 {strides = array<i32>} : memref<1x16x324xf32, #tpu.memory_space<vmem>>, vector<1x16x324xf32>,
    return
  }
  func.func @transform_0(%arg0: i32) -> (i32, i32, i32) {
    %c0_i32 = arith.constant 0 : i32
    %c0_i32_0 = arith.constant 0 : i32
    %c0_i32_1 = arith.constant 0 : i32
    return %arg0, %c0_i32, %c0_i32_0 : i32, i32, i32
  }
  func.func @transform_1(%arg0: i32) -> (i32, i32) {
    %c0_i32 = arith.constant 0 : i32
    %c0_i32_0 = arith.constant 0 : i32
    %c0_i32_1 = arith.constant 0 : i32
    return %c0_i32, %c0_i32_0 : i32, i32
  }
  func.func @transform_2(%arg0: i32) -> (i32, i32) {
    %c0_i32 = arith.constant 0 : i32
    %c0_i32_0 = arith.constant 0 : i32
    %c0_i32_1 = arith.constant 0 : i32
    return %c0_i32, %c0_i32_0 : i32, i32
  }
  func.func @transform_3(%arg0: i32) -> (i32, i32) {
    %c0_i32 = arith.constant 0 : i32
    %c0_i32_0 = arith.constant 0 : i32
    %c0_i32_1 = arith.constant 0 : i32
    return %c0_i32, %c0_i32_0 : i32, i32
  }
  func.func @transform_4(%arg0: i32) -> (i32, i32, i32) {
    %c0_i32 = arith.constant 0 : i32
    %c0_i32_0 = arith.constant 0 : i32
    %c0_i32_1 = arith.constant 0 : i32
    return %arg0, %c0_i32, %c0_i32_0 : i32, i32, i32
  }
  func.func @transform_5(%arg0: i32) -> (i32, i32, i32) {
    %c0_i32 = arith.constant 0 : i32
    %c0_i32_0 = arith.constant 0 : i32
    %c0_i32_1 = arith.constant 0 : i32
    return %arg0, %c0_i32, %c0_i32_0 : i32, i32, i32
  }
}

</mosaic_0001>

<llo_original>
// kernel: tpu_custom_call.1
$region0: #{tpu_custom_call.1}
  #allocation0 [shape = 'u32[]', space=smem, size = 0x4, offset = 0x4, fixed_abs, tag = 'smem constant byte address 0x4 - core index']
  #allocation1 [shape = 'u32[72,128]{1,0:T(1,128)}', space=vmem, size = 0x9000, scoped, tag = 'internal scratch']
  #allocation2 [shape = 'bf16[72,324]{1,0:T(8,128)(2,1)}', space=vmem, size = 0xd800, scoped, tag = 'scratch operand']
  %s0 = inlined_call_operand.hbm [shape: bf16[2,8,324], index: 0, kind: input, shape index: {}]
  %s1 = inlined_call_operand.vmem [shape: bf16[32,72], index: 1, kind: input, shape index: {}]
  %s2 = inlined_call_operand.vmem [shape: f32[16,1], index: 2, kind: input, shape index: {}]
  %s3 = inlined_call_operand.hbm [shape: f32[1,324], index: 3, kind: input, shape index: {}]
  %s4 = inlined_call_operand.hbm [shape: f32[2,16,324], index: 4, kind: output, shape index: {0}]
  %s5 = inlined_call_operand.vmem [shape: f32[2,1,1], index: 5, kind: output, shape index: {1}]
  %6 = xla_tuple %s4, %s5
  %s7 = sld [smem:[#allocation0]]
  $region65: #{tpu_custom_call.1} parent=0
    _
  %s9 = ssub.s32 1, %s7
  %s10 = scalar_select 0, %s9, %s7
  $region1: #{tpu_custom_call.1} parent=0
    #allocation3 [shape = 'u8[12288]{0}', space=vmem, size = 0x3000, scoped, tag = 'input window, operand 0']
    #allocation4 [shape = 's32[2]{0}', space=sflag, size = 0x8, scoped, tag = 'scoped memory for tpu_custom_call.1']
    #allocation5 [shape = 's32[2]{0}', space=sflag, size = 0x8, scoped, tag = 'scoped memory for tpu_custom_call.1']
    #allocation6 [shape = 'u8[1536]{0}', space=vmem, size = 0x800, scoped, tag = 'input window, operand 3, single buffered']
    #allocation7 [shape = 's32[1]{0}', space=sflag, size = 0x4, scoped, tag = 'scoped memory for tpu_custom_call.1']
    #allocation8 [shape = 'u8[49152]{0}', space=vmem, size = 0xc000, scoped, tag = 'output window, operand 0']
    %11 = vsyncpa [#allocation4], 0
    %s12 = scalar_lea.sflag [#allocation4], 1
    %13 = vsyncpa %s12, 0
    %14 = vsyncpa [#allocation7], 0
    %15 = vsyncpa [#allocation5], 0
    %s16 = scalar_lea.sflag [#allocation5], 1
    %17 = vsyncpa %s16, 0
    loop: start=0, step=1, limit=4
    $region2: #{tpu_custom_call.1} parent=1 // loop_pre_header
      _
    $region3: #{tpu_custom_call.1} parent=1 // loop_header
      %s19 = sphi 0, %s23
      %p20 = scmp.ge.s32.totalorder %s19, 4
      %s29 = sphi 0, %s31
      %s32 = sphi 0, %s29
      %s33 = sphi 0, %s32
      %s49 = sphi 0, %s33
      %s53 = sphi 0, %s53
      %s55 = sphi 0, %s53
      %s56 = sphi 0, %s55
      %s70 = sphi 0, %s56
      %s74 = sphi 0, %s74
      %s76 = sphi 0, %s74
      %s77 = sphi 0, %s76
      %s91 = sphi 0, %s77
      %s95 = sphi 0, %s95
      %s97 = sphi 0, %s95
      %s98 = sphi 0, %s97
      %s112 = sphi 0, %s98
      %s118 = sphi 0, %s120
      %s121 = sphi 0, %s118
      %s122 = sphi 0, %s121
      %s138 = sphi 0, %s122
      %s144 = sphi 0, %s146
      %s147 = sphi 0, %s144
      %s148 = sphi 0, %s147
      %s164 = sphi 0, %s148
    $region4: #{tpu_custom_call.1} parent=1 // loop_header_branch
      %22 = sbr.rel (%p20) target = $region8
    $region5: #{tpu_custom_call.1} parent=1 // loop_body
      %s24 = ssub.s32 %s19, 1
      %s25 = ssub.s32 %s19, 2
      %s26 = sadd.s32 %s19, 1
      %s27 = ssub.s32 %s19, %s26
      %p28 = scmp.eq.s32.totalorder %s27, 0
      %s30 = sadd.s32 %s29, 1
      %s31 = scalar_select %p28, %s29, %s30
      %p34 = pneg %p28
      %p35 = scmp.eq.s32.totalorder %s19, 1
      %p36 = por %p34, %p35
      %p37 = scmp.ne.s32.totalorder %s29, %s32
      %p38 = scmp.eq.s32.totalorder %s19, 0
      %p39 = por %p37, %p38
      %p40 = scmp.ne.s32.totalorder %s29, %s32
      %p41 = scmp.eq.s32.totalorder %s24, 1
      %p42 = por %p40, %p41
      %p43 = scmp.ne.s32.totalorder %s32, %s33
      %p44 = scmp.eq.s32.totalorder %s24, 0
      %p45 = por %p43, %p44
      %p46 = scmp.ne.s32.totalorder %s32, %s33
      %p47 = scmp.eq.s32.totalorder %s25, 1
      %p48 = por %p46, %p47
      %p50 = scmp.ne.s32.totalorder %s33, %s49
      %p51 = scmp.eq.s32.totalorder %s25, 0
      %p52 = por %p50, %p51
      %s54 = sadd.s32 %s53, 1
      %p57 = scmp.eq.s32.totalorder %s19, 1
      %p58 = scmp.ne.s32.totalorder %s53, %s55
      %p59 = scmp.eq.s32.totalorder %s19, 0
      %p60 = por %p58, %p59
      %p61 = scmp.ne.s32.totalorder %s53, %s55
      %p62 = scmp.eq.s32.totalorder %s24, 1
      %p63 = por %p61, %p62
      %p64 = scmp.ne.s32.totalorder %s55, %s56
      %p65 = scmp.eq.s32.totalorder %s24, 0
      %p66 = por %p64, %p65
      %p67 = scmp.ne.s32.totalorder %s55, %s56
      %p68 = scmp.eq.s32.totalorder %s25, 1
      %p69 = por %p67, %p68
      %p71 = scmp.ne.s32.totalorder %s56, %s70
      %p72 = scmp.eq.s32.totalorder %s25, 0
      %p73 = por %p71, %p72
      %s75 = sadd.s32 %s74, 1
      %p78 = scmp.eq.s32.totalorder %s19, 1
      %p79 = scmp.ne.s32.totalorder %s74, %s76
      %p80 = scmp.eq.s32.totalorder %s19, 0
      %p81 = por %p79, %p80
      %p82 = scmp.ne.s32.totalorder %s74, %s76
      %p83 = scmp.eq.s32.totalorder %s24, 1
      %p84 = por %p82, %p83
      %p85 = scmp.ne.s32.totalorder %s76, %s77
      %p86 = scmp.eq.s32.totalorder %s24, 0
      %p87 = por %p85, %p86
      %p88 = scmp.ne.s32.totalorder %s76, %s77
      %p89 = scmp.eq.s32.totalorder %s25, 1
      %p90 = por %p88, %p89
      %p92 = scmp.ne.s32.totalorder %s77, %s91
      %p93 = scmp.eq.s32.totalorder %s25, 0
      %p94 = por %p92, %p93
      %s96 = sadd.s32 %s95, 1
      %p99 = scmp.eq.s32.totalorder %s19, 1
      %p100 = scmp.ne.s32.totalorder %s95, %s97
      %p101 = scmp.eq.s32.totalorder %s19, 0
      %p102 = por %p100, %p101
      %p103 = scmp.ne.s32.totalorder %s95, %s97
      %p104 = scmp.eq.s32.totalorder %s24, 1
      %p105 = por %p103, %p104
      %p106 = scmp.ne.s32.totalorder %s97, %s98
      %p107 = scmp.eq.s32.totalorder %s24, 0
      %p108 = por %p106, %p107
      %p109 = scmp.ne.s32.totalorder %s97, %s98
      %p110 = scmp.eq.s32.totalorder %s25, 1
      %p111 = por %p109, %p110
      %p113 = scmp.ne.s32.totalorder %s98, %s112
      %p114 = scmp.eq.s32.totalorder %s25, 0
      %p115 = por %p113, %p114
      %s116 = ssub.s32 %s19, %s26
      %p117 = scmp.eq.s32.totalorder %s116, 0
      %s119 = sadd.s32 %s118, 1
      %s120 = scalar_select %p117, %s118, %s119
      %p123 = pneg %p117
      %p124 = scmp.eq.s32.totalorder %s19, 1
      %p125 = por %p123, %p124
      %p126 = scmp.ne.s32.totalorder %s118, %s121
      %p127 = scmp.eq.s32.totalorder %s19, 0
      %p128 = por %p126, %p127
      %p129 = scmp.ne.s32.totalorder %s118, %s121
      %p130 = scmp.eq.s32.totalorder %s24, 1
      %p131 = por %p129, %p130
      %p132 = scmp.ne.s32.totalorder %s121, %s122
      %p133 = scmp.eq.s32.totalorder %s24, 0
      %p134 = por %p132, %p133
      %p135 = scmp.ne.s32.totalorder %s121, %s122
      %p136 = scmp.eq.s32.totalorder %s25, 1
      %p137 = por %p135, %p136
      %p139 = scmp.ne.s32.totalorder %s122, %s138
      %p140 = scmp.eq.s32.totalorder %s25, 0
      %p141 = por %p139, %p140
      %s142 = ssub.s32 %s19, %s26
      %p143 = scmp.eq.s32.totalorder %s142, 0
      %s145 = sadd.s32 %s144, 1
      %s146 = scalar_select %p143, %s144, %s145
      %p149 = pneg %p143
      %p150 = scmp.eq.s32.totalorder %s19, 1
      %p151 = por %p149, %p150
      %p152 = scmp.ne.s32.totalorder %s144, %s147
      %p153 = scmp.eq.s32.totalorder %s19, 0
      %p154 = por %p152, %p153
      %p155 = scmp.ne.s32.totalorder %s144, %s147
      %p156 = scmp.eq.s32.totalorder %s24, 1
      %p157 = por %p155, %p156
      %p158 = scmp.ne.s32.totalorder %s147, %s148
      %p159 = scmp.eq.s32.totalorder %s24, 0
      %p160 = por %p158, %p159
      %p161 = scmp.ne.s32.totalorder %s147, %s148
      %p162 = scmp.eq.s32.totalorder %s25, 1
      %p163 = por %p161, %p162
      %p165 = scmp.ne.s32.totalorder %s148, %s164
      %p166 = scmp.eq.s32.totalorder %s25, 0
      %p167 = por %p165, %p166
      %p168 = scmp.le.s32.totalorder 1, %s19
      %p169 = scmp.lt.s32.totalorder %s19, 3
      %p170 = pnand %p168, %p169
      %p171 = pneg %p170
      // Predicated region
      $region9: #{tpu_custom_call.1} parent=5 // pred_check
        _
      $region10: #{tpu_custom_call.1} parent=5 // pred_check_branch
        %173 = sbr.rel (%p170) target = $region12
      $region11: #{tpu_custom_call.1} parent=5 // pred_region
        %s174 = ssub.s32 %s19, 1
        // Predicated region
        $region13: #{tpu_custom_call.1} parent=11 // pred_check
          %p175 = pneg %p66
        $region14: #{tpu_custom_call.1} parent=11 // pred_check_branch
          %177 = sbr.rel (%p175) target = $region16
        $region15: #{tpu_custom_call.1} parent=11 // pred_region
          _
        $region16: #{tpu_custom_call.1} parent=11 // pred_fallthru
          _
        // Predicated region
        $region17: #{tpu_custom_call.1} parent=11 // pred_check
          %p178 = pneg %p87
        $region18: #{tpu_custom_call.1} parent=11 // pred_check_branch
          %180 = sbr.rel (%p178) target = $region20
        $region19: #{tpu_custom_call.1} parent=11 // pred_region
          _
        $region20: #{tpu_custom_call.1} parent=11 // pred_fallthru
          _
        // Predicated region
        $region21: #{tpu_custom_call.1} parent=11 // pred_check
          %p181 = pneg %p108
        $region22: #{tpu_custom_call.1} parent=11 // pred_check_branch
          %183 = sbr.rel (%p181) target = $region24
        $region23: #{tpu_custom_call.1} parent=11 // pred_region
          %185 = vsyncadd [#allocation7], 0
          %s187 = sshll.u32 %s3, 4
          %s188 = int_to_ptr.hbm [resolvable:$true] %s187
          %s189 = sshll.u32 [#allocation6], 4
          %s190 = int_to_ptr.vmem [resolvable:$true] %s189
          %192 = dma.hbm_to_vmem [thread:$0]  %s188, 48, %s190, [#allocation7]
        $region24: #{tpu_custom_call.1} parent=11 // pred_fallthru
          _
      $region12: #{tpu_custom_call.1} parent=5 // pred_fallthru
        _
      %p193 = scmp.lt.s32.totalorder %s19, 2
      // Predicated region
      $region25: #{tpu_custom_call.1} parent=5 // pred_check
        %p194 = pneg %p193
      $region26: #{tpu_custom_call.1} parent=5 // pred_check_branch
        %196 = sbr.rel (%p194) target = $region28
      $region27: #{tpu_custom_call.1} parent=5 // pred_region
        // Predicated region
        $region29: #{tpu_custom_call.1} parent=27 // pred_check
          %p197 = pneg %p39
        $region30: #{tpu_custom_call.1} parent=27 // pred_check_branch
          %199 = sbr.rel (%p197) target = $region32
        $region31: #{tpu_custom_call.1} parent=27 // pred_region
          %s200 = sand.u32 %s29, 1
          %s201 = scalar_lea.sflag [#allocation4], %s200
          %s202 = sand.u32 %s29, 1
          %s203 = smul.addr %s202, 12
          %s204 = scalar_lea.vmem [#allocation3], %s203
          %206 = vsyncadd %s201, 0
          %s207 = smul.addr %s19, 3
          %s208 = smul.addr %s207, 4
          %s209 = scalar_lea.hbm %s0, %s208
          %s211 = sshll.u32 %s209, 4
          %s212 = int_to_ptr.hbm [resolvable:$true] %s211
          %s213 = sshll.u32 %s204, 4
          %s214 = int_to_ptr.vmem [resolvable:$true] %s213
          %216 = dma.hbm_to_vmem [thread:$0]  %s212, 192, %s214, %s201
        $region32: #{tpu_custom_call.1} parent=27 // pred_fallthru
          _
      $region28: #{tpu_custom_call.1} parent=5 // pred_fallthru
        _
      %p217 = scmp.le.s32.totalorder 1, %s19
      %p218 = scmp.lt.s32.totalorder %s19, 3
      %p219 = pnand %p217, %p218
      %p220 = pneg %p219
      // Predicated region
      $region33: #{tpu_custom_call.1} parent=5 // pred_check
        _
      $region34: #{tpu_custom_call.1} parent=5 // pred_check_branch
        %222 = sbr.rel (%p219) target = $region36
      $region35: #{tpu_custom_call.1} parent=5 // pred_region
        %s223 = ssub.s32 %s19, 1
        %s224 = sand.u32 %s32, 1
        %s225 = scalar_lea.sflag [#allocation4], %s224
        %s226 = sand.u32 %s32, 1
        %s227 = smul.addr %s226, 12
        %s228 = scalar_lea.vmem [#allocation3], %s227
        // Predicated region
        $region37: #{tpu_custom_call.1} parent=35 // pred_check
          %p229 = pneg %p45
        $region38: #{tpu_custom_call.1} parent=35 // pred_check_branch
          %231 = sbr.rel (%p229) target = $region40
        $region39: #{tpu_custom_call.1} parent=35 // pred_region
          %233 = dma.done %s225, 192
        $region40: #{tpu_custom_call.1} parent=35 // pred_fallthru
          _
        // Predicated region
        $region41: #{tpu_custom_call.1} parent=35 // pred_check
          %p234 = pneg %p108
        $region42: #{tpu_custom_call.1} parent=35 // pred_check_branch
          %236 = sbr.rel (%p234) target = $region44
        $region43: #{tpu_custom_call.1} parent=35 // pred_region
          %238 = dma.done [#allocation7], 48
        $region44: #{tpu_custom_call.1} parent=35 // pred_fallthru
          _
        %s239 = sand.u32 %s32, 1
        %s240 = scalar_lea.sflag [#allocation4], %s239
        %s241 = sand.u32 %s32, 1
        %s242 = smul.addr %s241, 12
        %s243 = scalar_lea.vmem [#allocation3], %s242
        %p244 = pneg %p45
        %p245 = pneg %p42
        %p246 = pneg %p66
        %p247 = pneg %p63
        %p248 = pneg %p87
        %p249 = pneg %p84
        %p250 = pneg %p108
        %p251 = pneg %p105
        %p252 = pneg %p134
        %p253 = pneg %p131
        %s254 = sand.u32 %s121, 1
        %s255 = scalar_lea.sflag [#allocation5], %s254
        %s256 = sand.u32 %s121, 1
        %s257 = smul.addr %s256, 48
        %s258 = scalar_lea.vmem [#allocation8], %s257
        %p259 = pneg %p160
        %p260 = pneg %p157
        %p261 = scmp.lt.s32.totalorder %s24, 1
        %s262 = scalar_select %p261, %s24, 1
        %s263 = scalar_lea.vmem %s5, %s262
        %p264 = scmp.lt.s32.totalorder %s24, 1
        %s265 = scalar_select %p264, %s24, 1
        %s266 = scalar_lea.vmem %s5, %s265
        %v268 = vld [vmem:[%s228] sm:$0xff]
        %v269 = vld [vmem:[%s228 + $0x8] sm:$0xf]
        %270 = vst [vmem:[#allocation2] sm:$0xff] %v268
        %vm271 = vcmask 551936
        %272 = vst.msk [vmem:[#allocation2 + $0x8] sm:$0xf] %vm271, %v269
        %v275 = vunpack.c.l.b16 %v268
        %v276 = vunpack.c.h.b16 %v268
        %v277 = vunpack.c.l.b16 %v269
        %v278 = vpack.c.b16 %v275, %v275
        %v279 = vpack.c.b16 %v276, %v276
        %v280 = vpack.c.b16 %v277, %v277
        %281 = vrot.lane.b32.xlu0 %v278, 127
        %v282 = vpop.permute.xlu0 %281
        %283 = vrot.lane.b32.xlu0 %v279, 127
        %v284 = vpop.permute.xlu0 %283
        %285 = vrot.lane.b32.xlu0 %v280, 127
        %v286 = vpop.permute.xlu0 %285
        %vm287 = vcmask 1039360
        %v288 = vsel %vm287, %v282, %v284
        %v289 = vsel %vm287, %v284, %v286
        %290 = vrot.lane.b32.xlu0 %v278, 67
        %v291 = vpop.permute.xlu0 %290
        %vm292 = vcmask 547840
        %v295 = vsel %vm292, %v286, %v291
        %v297 = vunpack.c.l.b16 %v288
        %v298 = vunpack.c.l.b16 %v289
        %v299 = vunpack.c.l.b16 %v295
        %v300 = vpack.c.b16 %v298, %v297
        %v301 = vpack.c.b16 %v299, %v299
        %304 = vst [vmem:[#allocation2 + $0xc] sm:$0xff] %v300
        %305 = vst.msk [vmem:[#allocation2 + $0x14] sm:$0xf] %vm271, %v301
        %306 = vrot.lane.b32.xlu0 %v278, 126
        %v307 = vpop.permute.xlu0 %306
        %308 = vrot.lane.b32.xlu0 %v279, 126
        %v309 = vpop.permute.xlu0 %308
        %310 = vrot.lane.b32.xlu0 %v280, 126
        %v311 = vpop.permute.xlu0 %310
        %vm312 = vcmask 1031168
        %v313 = vsel %vm312, %v307, %v309
        %v314 = vsel %vm312, %v309, %v311
        %315 = vrot.lane.b32.xlu0 %v278, 66
        %v316 = vpop.permute.xlu0 %315
        %vm317 = vcmask 539648
        %v320 = vsel %vm317, %v311, %v316
        %v322 = vunpack.c.l.b16 %v313
        %v323 = vunpack.c.l.b16 %v314
        %v324 = vunpack.c.l.b16 %v320
        %v325 = vpack.c.b16 %v323, %v322
        %v326 = vpack.c.b16 %v324, %v324
        %329 = vst [vmem:[#allocation2 + $0x18] sm:$0xff] %v325
        %330 = vst.msk [vmem:[#allocation2 + $0x20] sm:$0xf] %vm271, %v326
        %331 = vrot.lane.b32.xlu0 %v278, 110
        %v332 = vpop.permute.xlu0 %331
        %333 = vrot.lane.b32.xlu0 %v279, 110
        %v334 = vpop.permute.xlu0 %333
        %335 = vrot.lane.b32.xlu0 %v280, 110
        %v336 = vpop.permute.xlu0 %335
        %vm337 = vcmask 900096
        %v338 = vsel %vm337, %v332, %v334
        %v339 = vsel %vm337, %v334, %v336
        %340 = vrot.lane.b32.xlu0 %v278, 50
        %v341 = vpop.permute.xlu0 %340
        %vm342 = vcmask 408576
        %v345 = vsel %vm342, %v336, %v341
        %v347 = vunpack.c.l.b16 %v338
        %v348 = vunpack.c.l.b16 %v339
        %v349 = vunpack.c.l.b16 %v345
        %v350 = vpack.c.b16 %v348, %v347
        %v351 = vpack.c.b16 %v349, %v349
        %354 = vst [vmem:[#allocation2 + $0x24] sm:$0xff] %v350
        %355 = vst.msk [vmem:[#allocation2 + $0x2c] sm:$0xf] %vm271, %v351
        %356 = vrot.lane.b32.xlu0 %v278, 109
        %v357 = vpop.permute.xlu0 %356
        %358 = vrot.lane.b32.xlu0 %v279, 109
        %v359 = vpop.permute.xlu0 %358
        %360 = vrot.lane.b32.xlu0 %v280, 109
        %v361 = vpop.permute.xlu0 %360
        %vm362 = vcmask 891904
        %v363 = vsel %vm362, %v357, %v359
        %v364 = vsel %vm362, %v359, %v361
        %365 = vrot.lane.b32.xlu0 %v278, 49
        %v366 = vpop.permute.xlu0 %365
        %vm367 = vcmask 400384
        %v370 = vsel %vm367, %v361, %v366
        %v372 = vunpack.c.l.b16 %v363
        %v373 = vunpack.c.l.b16 %v364
        %v374 = vunpack.c.l.b16 %v370
        %v375 = vpack.c.b16 %v373, %v372
        %v376 = vpack.c.b16 %v374, %v374
        %379 = vst [vmem:[#allocation2 + $0x30] sm:$0xff] %v375
        %380 = vst.msk [vmem:[#allocation2 + $0x38] sm:$0xf] %vm271, %v376
        %381 = vrot.lane.b32.xlu0 %v278, 108
        %v382 = vpop.permute.xlu0 %381
        %383 = vrot.lane.b32.xlu0 %v279, 108
        %v384 = vpop.permute.xlu0 %383
        %385 = vrot.lane.b32.xlu0 %v280, 108
        %v386 = vpop.permute.xlu0 %385
        %vm387 = vcmask 883712
        %v388 = vsel %vm387, %v382, %v384
        %v389 = vsel %vm387, %v384, %v386
        %390 = vrot.lane.b32.xlu0 %v278, 48
        %v391 = vpop.permute.xlu0 %390
        %vm392 = vcmask 392192
        %v395 = vsel %vm392, %v386, %v391
        %v397 = vunpack.c.l.b16 %v388
        %v398 = vunpack.c.l.b16 %v389
        %v399 = vunpack.c.l.b16 %v395
        %v400 = vpack.c.b16 %v398, %v397
        %v401 = vpack.c.b16 %v399, %v399
        %404 = vst [vmem:[#allocation2 + $0x3c] sm:$0xff] %v400
        %405 = vst.msk [vmem:[#allocation2 + $0x44] sm:$0xf] %vm271, %v401
        %406 = vrot.lane.b32.xlu0 %v278, 92
        %v407 = vpop.permute.xlu0 %406
        %408 = vrot.lane.b32.xlu0 %v279, 92
        %v409 = vpop.permute.xlu0 %408
        %410 = vrot.lane.b32.xlu0 %v280, 92
        %v411 = vpop.permute.xlu0 %410
        %vm412 = vcmask 752640
        %v413 = vsel %vm412, %v407, %v409
        %v414 = vsel %vm412, %v409, %v411
        %415 = vrot.lane.b32.xlu0 %v278, 32
        %v416 = vpop.permute.xlu0 %415
        %vm417 = vcmask 261120
        %v420 = vsel %vm417, %v411, %v416
        %v422 = vunpack.c.l.b16 %v413
        %v423 = vunpack.c.l.b16 %v414
        %v424 = vunpack.c.l.b16 %v420
        %v425 = vpack.c.b16 %v423, %v422
        %v426 = vpack.c.b16 %v424, %v424
        %429 = vst [vmem:[#allocation2 + $0x48] sm:$0xff] %v425
        %430 = vst.msk [vmem:[#allocation2 + $0x50] sm:$0xf] %vm271, %v426
        %431 = vrot.lane.b32.xlu0 %v278, 91
        %v432 = vpop.permute.xlu0 %431
        %433 = vrot.lane.b32.xlu0 %v279, 91
        %v434 = vpop.permute.xlu0 %433
        %435 = vrot.lane.b32.xlu0 %v280, 91
        %v436 = vpop.permute.xlu0 %435
        %vm437 = vcmask 744448
        %v438 = vsel %vm437, %v432, %v434
        %v439 = vsel %vm437, %v434, %v436
        %440 = vrot.lane.b32.xlu0 %v278, 31
        %v441 = vpop.permute.xlu0 %440
        %vm442 = vcmask 252928
        %v445 = vsel %vm442, %v436, %v441
        %v447 = vunpack.c.l.b16 %v438
        %v448 = vunpack.c.l.b16 %v439
        %v449 = vunpack.c.l.b16 %v445
        %v450 = vpack.c.b16 %v448, %v447
        %v451 = vpack.c.b16 %v449, %v449
        %454 = vst [vmem:[#allocation2 + $0x54] sm:$0xff] %v450
        %455 = vst.msk [vmem:[#allocation2 + $0x5c] sm:$0xf] %vm271, %v451
        %456 = vrot.lane.b32.xlu0 %v278, 90
        %v457 = vpop.permute.xlu0 %456
        %458 = vrot.lane.b32.xlu0 %v279, 90
        %v459 = vpop.permute.xlu0 %458
        %460 = vrot.lane.b32.xlu0 %v280, 90
        %v461 = vpop.permute.xlu0 %460
        %vm462 = vcmask 736256
        %v463 = vsel %vm462, %v457, %v459
        %v464 = vsel %vm462, %v459, %v461
        %465 = vrot.lane.b32.xlu0 %v278, 30
        %v466 = vpop.permute.xlu0 %465
        %vm467 = vcmask 244736
        %v470 = vsel %vm467, %v461, %v466
        %v472 = vunpack.c.l.b16 %v463
        %v473 = vunpack.c.l.b16 %v464
        %v474 = vunpack.c.l.b16 %v470
        %v475 = vpack.c.b16 %v473, %v472
        %v476 = vpack.c.b16 %v474, %v474
        %479 = vst [vmem:[#allocation2 + $0x60] sm:$0xff] %v475
        %480 = vst.msk [vmem:[#allocation2 + $0x68] sm:$0xf] %vm271, %v476
        %v481 = vld [vmem:[%s1] sm:$0xf]
        %v482 = vld [vmem:[%s1 + $0x4] sm:$0xf]
        %v483 = vld [vmem:[%s1 + $0x8] sm:$0xf]
        %v484 = vld [vmem:[%s1 + $0xc] sm:$0xf]
        %v485 = vld [vmem:[#allocation2] sm:$0xff]
        %v486 = vld [vmem:[#allocation2 + $0x8] sm:$0xf]
        %v487 = vld [vmem:[#allocation2 + $0xc] sm:$0xff]
        %v488 = vld [vmem:[#allocation2 + $0x14] sm:$0xf]
        %v489 = vld [vmem:[#allocation2 + $0x18] sm:$0xff]
        %v490 = vld [vmem:[#allocation2 + $0x20] sm:$0xf]
        %v491 = vld [vmem:[#allocation2 + $0x24] sm:$0xff]
        %v492 = vld [vmem:[#allocation2 + $0x2c] sm:$0xf]
        %v493 = vld [vmem:[#allocation2 + $0x30] sm:$0xff]
        %v494 = vld [vmem:[#allocation2 + $0x38] sm:$0xf]
        %v495 = vld [vmem:[#allocation2 + $0x3c] sm:$0xff]
        %v496 = vld [vmem:[#allocation2 + $0x44] sm:$0xf]
        %v497 = vld [vmem:[#allocation2 + $0x48] sm:$0xff]
        %v498 = vld [vmem:[#allocation2 + $0x50] sm:$0xf]
        %v499 = vld [vmem:[#allocation2 + $0x54] sm:$0xff]
        %v500 = vld [vmem:[#allocation2 + $0x5c] sm:$0xf]
        %v501 = vld [vmem:[#allocation2 + $0x60] sm:$0xff]
        %v502 = vld [vmem:[#allocation2 + $0x68] sm:$0xf]
        %v507 = vunpack.c.l.b16 %v481
        %v508 = vunpack.c.l.b16 %v482
        %v509 = vunpack.c.l.b16 %v483
        %v510 = vunpack.c.l.b16 %v484
        %v511 = vpack.c.b16 %v508, %v507
        %v512 = vpack.c.b16 %v510, %v509
        %v531 = vunpack.c.l.b16 %v485
        %v532 = vunpack.c.h.b16 %v485
        %v533 = vunpack.c.l.b16 %v486
        %v534 = vunpack.c.l.b16 %v487
        %v535 = vunpack.c.h.b16 %v487
        %v536 = vunpack.c.l.b16 %v488
        %v537 = vunpack.c.l.b16 %v489
        %v538 = vunpack.c.h.b16 %v489
        %v539 = vunpack.c.l.b16 %v490
        %v540 = vunpack.c.l.b16 %v491
        %v541 = vunpack.c.h.b16 %v491
        %v542 = vunpack.c.l.b16 %v492
        %v543 = vunpack.c.l.b16 %v493
        %v544 = vunpack.c.h.b16 %v493
        %v545 = vunpack.c.l.b16 %v494
        %v546 = vunpack.c.l.b16 %v495
        %v547 = vunpack.c.h.b16 %v495
        %v548 = vunpack.c.l.b16 %v496
        %v549 = vunpack.c.l.b16 %v497
        %v550 = vunpack.c.h.b16 %v497
        %v551 = vunpack.c.l.b16 %v498
        %v552 = vunpack.c.l.b16 %v499
        %v553 = vunpack.c.h.b16 %v499
        %v554 = vunpack.c.l.b16 %v500
        %v555 = vunpack.c.l.b16 %v501
        %v556 = vunpack.c.h.b16 %v501
        %v557 = vunpack.c.l.b16 %v502
        %v558 = vpack.c.b16 %v534, %v531
        %v559 = vpack.c.b16 %v535, %v532
        %v560 = vpack.c.b16 %v536, %v533
        %v561 = vpack.c.b16 %v540, %v537
        %v562 = vpack.c.b16 %v541, %v538
        %v563 = vpack.c.b16 %v542, %v539
        %v564 = vpack.c.b16 %v546, %v543
        %v565 = vpack.c.b16 %v547, %v544
        %v566 = vpack.c.b16 %v548, %v545
        %v567 = vpack.c.b16 %v552, %v549
        %v568 = vpack.c.b16 %v553, %v550
        %v569 = vpack.c.b16 %v554, %v551
        %v570 = vpack.c.b16 %v555, %v555
        %v571 = vpack.c.b16 %v556, %v556
        %v572 = vpack.c.b16 %v557, %v557
        %vm585 = vcmask 588800
        %v587 = vsel %vm585, %v511, 0
        %v590 = vsel %vm585, %v512, 0
        %vm592 = vcmask 1043456
        %v594 = vsel %vm592, %v570, 0
        %v597 = vsel %vm592, %v571, 0
        %v600 = vsel %vm592, %v572, 0
        %602 = vmatpush.bf16.msra.mxu0 0
        %603 = vmatpush.bf16.msra.mxu0 0
        %604 = vmatpush.bf16.msra.mxu0 0
        %605 = vmatpush.bf16.msra.mxu0 %v594
        %606 = vmatpush.bf16.msra.mxu0 %v567
        %607 = vmatpush.bf16.msra.mxu0 %v564
        %608 = vmatpush.bf16.msra.mxu0 %v561
        %609 = vmatpush.bf16.msra.mxu0 %v558
        %610 = vmatmul.bf16.gmra.mxu0 %v587
        %v611 = vpop.f32.mrf.mxu0
        %v612 = vadd.f32 0.0, %v611
        %v613 = vpop.f32.mrf.mxu0
        %v614 = vadd.f32 0.0, %v613
        %615 = vmatmul.bf16.gmra.mxu0 %v590
        %v616 = vpop.f32.mrf.mxu0
        %v617 = vadd.f32 0.0, %v616
        %v618 = vpop.f32.mrf.mxu0
        %v619 = vadd.f32 0.0, %v618
        %620 = vdwg.mxu0
        %621 = vmatpush.bf16.msra.mxu0 0
        %622 = vmatpush.bf16.msra.mxu0 0
        %623 = vmatpush.bf16.msra.mxu0 0
        %624 = vmatpush.bf16.msra.mxu0 %v597
        %625 = vmatpush.bf16.msra.mxu0 %v568
        %626 = vmatpush.bf16.msra.mxu0 %v565
        %627 = vmatpush.bf16.msra.mxu0 %v562
        %628 = vmatpush.bf16.msra.mxu0 %v559
        %629 = vmatmul.bf16.gmra.mxu0 %v587
        %v630 = vpop.f32.mrf.mxu0
        %v631 = vadd.f32 0.0, %v630
        %v632 = vpop.f32.mrf.mxu0
        %v633 = vadd.f32 0.0, %v632
        %634 = vmatmul.bf16.gmra.mxu0 %v590
        %v635 = vpop.f32.mrf.mxu0
        %v636 = vadd.f32 0.0, %v635
        %v637 = vpop.f32.mrf.mxu0
        %v638 = vadd.f32 0.0, %v637
        %639 = vdwg.mxu0
        %640 = vmatpush.bf16.msra.mxu0 0
        %641 = vmatpush.bf16.msra.mxu0 0
        %642 = vmatpush.bf16.msra.mxu0 0
        %643 = vmatpush.bf16.msra.mxu0 %v600
        %644 = vmatpush.bf16.msra.mxu0 %v569
        %645 = vmatpush.bf16.msra.mxu0 %v566
        %646 = vmatpush.bf16.msra.mxu0 %v563
        %647 = vmatpush.bf16.msra.mxu0 %v560
        %648 = vmatmul.bf16.gmra.mxu0 %v587
        %v649 = vpop.f32.mrf.mxu0
        %v650 = vadd.f32 0.0, %v649
        %v651 = vpop.f32.mrf.mxu0
        %v652 = vadd.f32 0.0, %v651
        %653 = vmatmul.bf16.gmra.mxu0 %v590
        %v654 = vpop.f32.mrf.mxu0
        %v655 = vadd.f32 0.0, %v654
        %v656 = vpop.f32.mrf.mxu0
        %v657 = vadd.f32 0.0, %v656
        %658 = vdwg.mxu0
        %v659 = vld [vmem:[#allocation6] sm:$0x7]
        %v661 = vperm.slane %v659, 0
        %v662 = vperm.slane %v659, 1
        %v663 = vperm.slane %v659, 2
        %v667 = vmul.f32 %v617, %v661
        %v668 = vmul.f32 %v636, %v662
        %v669 = vmul.f32 %v655, %v663
        %v670 = vmul.f32 %v619, %v661
        %v671 = vmul.f32 %v638, %v662
        %v672 = vmul.f32 %v657, %v663
        %v673 = vmul.f32 %v667, %v667
        %v674 = vmul.f32 %v668, %v668
        %v675 = vmul.f32 %v669, %v669
        %v676 = vmul.f32 %v670, %v670
        %v677 = vmul.f32 %v671, %v671
        %v678 = vmul.f32 %v672, %v672
        %v679 = vadd.f32 %v673, %v674
        %vm680 = vcmask 556032
        %v681 = vsel %vm680, %v675, 0.0
        %v682 = vadd.f32 %v679, %v681
        %v683 = vadd.f32 %v682, %v676
        %v684 = vadd.f32 %v683, %v677
        %v685 = vsel %vm680, %v678, 0.0
        %v686 = vadd.f32 %v684, %v685
        %687 = vadd.xlane.f32.xlu0 %v686
        %v688 = vpop.xlane.xlu0 %687
        %v689 = vrot.slane %v688, 4
        %v690 = vadd.f32 %v688, %v689
        %v691 = vrot.slane %v690, 2
        %v692 = vadd.f32 %v690, %v691
        %v693 = vrot.slane %v692, 1
        %v694 = vadd.f32 %v692, %v693
        %s695 = vtos %v694
        %v696 = vstv %s695
        %vm697 = vcmask 0
        %698 = vst.msk [vmem:[%s266] sm:$0x1] %vm697, %v696
        %v699 = vld [vmem:[%s2] sm:$0xff]
        %v700 = vld [vmem:[%s2 + $0x8] sm:$0xff]
        %702 = vset.pattern.permute.xlu0 0
        %703 = vperm.xlu0 %702, %v699
        %v704 = vpop.permute.xlu0 %703
        %707 = vset.pattern.permute.xlu0 0
        %708 = vperm.xlu0 %707, %v700
        %v709 = vpop.permute.xlu0 %708
        %v711 = vadd.f32 %v612, %v704
        %v712 = vadd.f32 %v631, %v704
        %v713 = vadd.f32 %v650, %v704
        %v714 = vadd.f32 %v614, %v709
        %v715 = vadd.f32 %v633, %v709
        %v716 = vadd.f32 %v652, %v709
        %717 = vst [vmem:[%s258] sm:$0xff] %v711
        %718 = vst [vmem:[%s258 + $0x8] sm:$0xff] %v712
        %719 = vst.msk [vmem:[%s258 + $0x10] sm:$0xff] %vm680, %v713
        %720 = vst [vmem:[%s258 + $0x18] sm:$0xff] %v714
        %721 = vst [vmem:[%s258 + $0x20] sm:$0xff] %v715
        %722 = vst.msk [vmem:[%s258 + $0x28] sm:$0xff] %vm680, %v716
        %s723 = sand.u32 %s121, 1
        %s724 = scalar_lea.sflag [#allocation5], %s723
        %s725 = sand.u32 %s121, 1
        %s726 = smul.addr %s725, 48
        %s727 = scalar_lea.vmem [#allocation8], %s726
        %p728 = scmp.lt.s32.totalorder %s24, 1
        %s729 = scalar_select %p728, %s24, 1
        %s730 = scalar_lea.vmem %s5, %s729
        // Predicated region
        $region45: #{tpu_custom_call.1} parent=35 // pred_check
          %p731 = pneg %p131
        $region46: #{tpu_custom_call.1} parent=35 // pred_check_branch
          %733 = sbr.rel (%p731) target = $region48
        $region47: #{tpu_custom_call.1} parent=35 // pred_region
          %735 = vsyncadd %s724, 0
          %s736 = smul.addr %s24, 6
          %s737 = smul.addr %s736, 8
          %s738 = scalar_lea.hbm %s4, %s737
          %s739 = sshll.u32 %s727, 4
          %s740 = int_to_ptr.vmem [resolvable:$true] %s739
          %s741 = sshll.u32 %s738, 4
          %s742 = int_to_ptr.hbm [resolvable:$true] %s741
          %747 = dma.vmem_to_hbm [thread:$0]  %s740, 768, %s742, %s724, 384, 384, 24
        $region48: #{tpu_custom_call.1} parent=35 // pred_fallthru
          _
        // Predicated region
        $region49: #{tpu_custom_call.1} parent=35 // pred_check
          %p748 = pneg %p157
        $region50: #{tpu_custom_call.1} parent=35 // pred_check_branch
          %750 = sbr.rel (%p748) target = $region52
        $region51: #{tpu_custom_call.1} parent=35 // pred_region
          _
        $region52: #{tpu_custom_call.1} parent=35 // pred_fallthru
          _
      $region36: #{tpu_custom_call.1} parent=5 // pred_fallthru
        _
      %p751 = scmp.le.s32.totalorder 2, %s19
      // Predicated region
      $region53: #{tpu_custom_call.1} parent=5 // pred_check
        %p752 = pneg %p751
      $region54: #{tpu_custom_call.1} parent=5 // pred_check_branch
        %754 = sbr.rel (%p752) target = $region56
      $region55: #{tpu_custom_call.1} parent=5 // pred_region
        %s755 = ssub.s32 %s19, 2
        // Predicated region
        $region57: #{tpu_custom_call.1} parent=55 // pred_check
          %p756 = pneg %p137
        $region58: #{tpu_custom_call.1} parent=55 // pred_check_branch
          %758 = sbr.rel (%p756) target = $region60
        $region59: #{tpu_custom_call.1} parent=55 // pred_region
          %s759 = sand.u32 %s122, 1
          %s760 = scalar_lea.sflag [#allocation5], %s759
          %s761 = sand.u32 %s122, 1
          %s762 = smul.addr %s761, 48
          %s763 = scalar_lea.vmem [#allocation8], %s762
          %765 = dma.done %s760, 768
        $region60: #{tpu_custom_call.1} parent=55 // pred_fallthru
          _
        // Predicated region
        $region61: #{tpu_custom_call.1} parent=55 // pred_check
          %p766 = pneg %p163
        $region62: #{tpu_custom_call.1} parent=55 // pred_check_branch
          %768 = sbr.rel (%p766) target = $region64
        $region63: #{tpu_custom_call.1} parent=55 // pred_region
          %p769 = scmp.lt.s32.totalorder %s25, 1
          %s770 = scalar_select %p769, %s25, 1
          %s771 = scalar_lea.vmem %s5, %s770
        $region64: #{tpu_custom_call.1} parent=55 // pred_fallthru
          _
      $region56: #{tpu_custom_call.1} parent=5 // pred_fallthru
        _
    $region6: #{tpu_custom_call.1} parent=1 // loop_footer
      %s23 = sadd.s32 1, %s19
    $region7: #{tpu_custom_call.1} parent=1 // loop_footer_branch
      %18 = sbr.rel target = $region3
    $region8: #{tpu_custom_call.1} parent=1 // loop_exit
      _
    %772 = vsyncpa [#allocation4], 1
    %s773 = scalar_lea.sflag [#allocation4], 1
    %774 = vsyncpa %s773, 1
    %775 = vsyncpa [#allocation7], 1
    %776 = vsyncpa [#allocation5], 1
    %s777 = scalar_lea.sflag [#allocation5], 1
    %778 = vsyncpa %s777, 1

</llo_original>
